<compile_context>
chip_gen: v6e
topology: v6e:2x2x1
jax: 0.10.0
libtpu: 0.0.40
codegen_flags: <defaults>
</compile_context>

<pallas_src>
import functools

import jax
import jax.numpy as jnp
from jax import lax
from jax.experimental import pallas as pl
from jax.experimental.pallas import tpu as pltpu


def _round_up(x, m):
    return ((x + m - 1) // m) * m


def _leaky_relu(h, slope=0.05):
    return jnp.where(h >= 0.0, h, slope * h)


def _mlp_kernel(n_mid, compute_dtype, *refs):
    """One batch tile through the whole MLP.  Weights are VMEM-resident.

    refs (n_mid > 0):
      x_ref     : (TILE_B, IN_P)               f32
      w_in_ref  : (IN_P, HID_P)                bf16
      b_in_ref  : (1, HID_P)                   f32
      w_mid_ref : (n_mid, HID_P, HID_P)        bf16
      b_mid_ref : (n_mid, 1, HID_P)            f32
      w_out_ref : (HID_P, OUT_P)               bf16
      b_out_ref : (1, OUT_P)                   f32
      out_ref   : (TILE_B, OUT_P)              f32
    refs (n_mid == 0): same without w_mid_ref / b_mid_ref.
    """
    if n_mid > 0:
        (x_ref, w_in_ref, b_in_ref, w_mid_ref, b_mid_ref,
         w_out_ref, b_out_ref, out_ref) = refs
    else:
        (x_ref, w_in_ref, b_in_ref, w_out_ref, b_out_ref, out_ref) = refs

    # Layer 0: Linear + LeakyReLU(0.05).  bf16 MXU inputs, f32 accumulation.
    h = jnp.dot(x_ref[...].astype(compute_dtype), w_in_ref[...],
                preferred_element_type=jnp.float32) + b_in_ref[...]
    h = _leaky_relu(h)

    # Middle (n_hid -> n_hid) Linear + LeakyReLU layers.  Static Python
    # indices -> static ref slices (zero-cost views), fully visible to LLO.
    for i in range(n_mid):
        h = jnp.dot(h.astype(compute_dtype), w_mid_ref[i],
                    preferred_element_type=jnp.float32) + b_mid_ref[i]
        h = _leaky_relu(h)

    # Final Linear (no activation).
    h = jnp.dot(h.astype(compute_dtype), w_out_ref[...],
                preferred_element_type=jnp.float32) + b_out_ref[...]
    out_ref[...] = h.astype(out_ref.dtype)


def non_liner_transformer(x, weights, biases, *,
                          compute_dtype=jnp.bfloat16, tile_b=256):
    """Full MLP forward in one Pallas kernel, tiled over the batch.

    x:       (B, in_dim) float32
    weights: list of (d_in, d_out) float32  (len = n_layer + 1)
    biases:  list of (1, d_out)    float32
    """
    n_fc = len(weights)
    assert n_fc >= 2, "need at least the first and the final Linear"
    n_mid = n_fc - 2

    B, in_dim = x.shape
    n_hid = weights[0].shape[1]
    out_dim = weights[-1].shape[1]
    f32 = jnp.float32

    # --- lane/sublane friendly padding -------------------------------------
    in_p = _round_up(in_dim, 128)
    hid_p = _round_up(n_hid, 128)
    out_p = _round_up(out_dim, 128)

    b8 = _round_up(B, 8)
    if b8 >= tile_b:
        TILE_B = tile_b
        B_pad = _round_up(B, TILE_B)
    else:
        TILE_B = b8            # small batch: single tile, still sublane aligned
        B_pad = b8

    def pad2(a, r, c, dtype):
        out = jnp.zeros((r, c), dtype)
        return out.at[:a.shape[0], :a.shape[1]].set(a.astype(dtype))

    x_p = pad2(x, B_pad, in_p, f32)

    w_in = pad2(weights[0], in_p, hid_p, compute_dtype)
    b_in = pad2(biases[0], 1, hid_p, f32)
    w_out = pad2(weights[-1], hid_p, out_p, compute_dtype)
    b_out = pad2(biases[-1], 1, out_p, f32)

    operands = [x_p, w_in, b_in]
    in_specs = [
        pl.BlockSpec((TILE_B, in_p), lambda i: (i, 0)),      # x tile (pipelined)
        pl.BlockSpec((in_p, hid_p), lambda i: (0, 0)),       # W_in (resident)
        pl.BlockSpec((1, hid_p), lambda i: (0, 0)),          # b_in
    ]

    weight_elems_bf16 = w_in.size + w_out.size
    bias_elems_f32 = b_in.size + b_out.size
    if n_mid > 0:
        w_mid = jnp.stack([pad2(w, hid_p, hid_p, compute_dtype)
                           for w in weights[1:-1]])
        b_mid = jnp.stack([pad2(b, 1, hid_p, f32) for b in biases[1:-1]])
        operands += [w_mid, b_mid]
        in_specs += [
            pl.BlockSpec((n_mid, hid_p, hid_p), lambda i: (0, 0, 0)),  # stacked W_mid
            pl.BlockSpec((n_mid, 1, hid_p), lambda i: (0, 0, 0)),      # stacked b_mid
        ]
        weight_elems_bf16 += w_mid.size
        bias_elems_f32 += b_mid.size

    operands += [w_out, b_out]
    in_specs += [
        pl.BlockSpec((hid_p, out_p), lambda i: (0, 0)),      # W_out (resident)
        pl.BlockSpec((1, out_p), lambda i: (0, 0)),          # b_out
    ]
    out_specs = pl.BlockSpec((TILE_B, out_p), lambda i: (i, 0))

    grid = (B_pad // TILE_B,)

    # --- scheduler hints -----------------------------------------------------
    itemsize = jnp.dtype(compute_dtype).itemsize
    weight_bytes = weight_elems_bf16 * itemsize + bias_elems_f32 * 4
    flops = 2 * B_pad * (in_p * hid_p + n_mid * hid_p * hid_p + hid_p * out_p)
    bytes_accessed = x_p.size * 4 + B_pad * out_p * 4 + weight_bytes
    cost = pl.CostEstimate(flops=int(flops), transcendentals=0,
                           bytes_accessed=int(bytes_accessed))

    # VMEM budget: resident weights + double-buffered in/out tiles + activation
    # headroom; clamped to 64 MiB so it stays legal on v7x (64 MiB physical).
    act_bytes = 2 * (TILE_B * in_p + TILE_B * out_p) * 4       # double-buffered tiles
    scratch_bytes = 4 * TILE_B * hid_p * 4                      # live activations
    vmem_limit = int(max(32 * 2**20,
                         min(64 * 2**20,
                             2 * (weight_bytes + act_bytes + scratch_bytes))))
    # TODO(synk): if resident weights ever exceed ~48 MiB (v7x VMEM), stream
    # w_mid layer-by-layer with pltpu.emit_pipeline instead of keeping it resident.

    kernel = functools.partial(_mlp_kernel, n_mid, compute_dtype)

    out_padded = pl.pallas_call(
        kernel,
        grid=grid,
        in_specs=in_specs,
        out_specs=out_specs,
        out_shape=jax.ShapeDtypeStruct((B_pad, out_p), f32),
        compiler_params=pltpu.CompilerParams(
            dimension_semantics=("parallel",),
            vmem_limit_bytes=vmem_limit,
        ),
        cost_estimate=cost,
    )(*operands)

    return out_padded[:B, :out_dim]


def init_params(key, in_dim, n_hid, out_dim, n_layer):
    """Shapes/init matching the PyTorch module (xavier_uniform_ weights,
    PyTorch-default U(-1/sqrt(fan_in), 1/sqrt(fan_in)) biases)."""
    dims = ([(in_dim, n_hid)]
            + [(n_hid, n_hid) for _ in range(n_layer - 1)]
            + [(n_hid, out_dim)])
    weights, biases = [], []
    for (d_in, d_out) in dims:
        key, kw, kb = jax.random.split(key, 3)
        bound_w = (6.0 / (d_in + d_out)) ** 0.5
        w = jax.random.uniform(kw, (d_in, d_out), jnp.float32, -bound_w, bound_w)
        bound_b = 1.0 / (d_in ** 0.5)
        b = jax.random.uniform(kb, (1, d_out), jnp.float32, -bound_b, bound_b)
        weights.append(w)
        biases.append(b)
    return weights, biases


def reference_forward(x, weights, biases, compute_dtype=jnp.float32):
    """Pure-JAX reference.  compute_dtype=bfloat16 emulates the kernel's bf16
    MXU inputs (round inputs to bf16, exact products, f32 accumulation)."""
    h = x
    n_fc = len(weights)
    for i in range(n_fc):
        a = h.astype(compute_dtype).astype(jnp.float32)
        w = weights[i].astype(compute_dtype).astype(jnp.float32)
        h = jnp.dot(a, w, precision=lax.Precision.HIGHEST) + biases[i]
        if i < n_fc - 1:  # LeakyReLU(0.05) after every layer except the final Linear
            h = jnp.where(h >= 0.0, h, 0.05 * h)
    return h


if __name__ == "__main__":
    # Small shapes consistent with the module's forward (x: (batch, in_dim)).
    batch, in_dim, n_hid, out_dim, n_layer = 8, 16, 32, 8, 3

    key = jax.random.PRNGKey(0)
    key, kx = jax.random.split(key)
    x = jax.random.normal(kx, (batch, in_dim), jnp.float32)

    weights, biases = init_params(key, in_dim, n_hid, out_dim, n_layer)

    out = non_liner_transformer(x, weights, biases)
    out = jax.block_until_ready(out)

    # Compare against a reference that emulates bf16 MXU inputs / f32 accumulation,
    # and (loosely) against a full-f32 reference.
    ref_bf16 = reference_forward(x, weights, biases, compute_dtype=jnp.bfloat16)
    ref_f32 = reference_forward(x, weights, biases, compute_dtype=jnp.float32)

    assert out.shape == (batch, out_dim)
    assert jnp.allclose(out, ref_bf16, atol=2e-3, rtol=2e-3), \
        "mismatch vs bf16-emulated reference"
    assert jnp.allclose(out, ref_f32, atol=5e-2, rtol=5e-2), \
        "mismatch vs f32 reference"

    print("KERNEL_OK")
</pallas_src>

<mosaic_0001>
module attributes {stable_mosaic.version = 11 : i64} {
  func.func @_mlp_kernel(%arg0: i32, %arg1: memref<8x128xf32, #tpu.memory_space<vmem>>, %arg2: memref<128x128xbf16, #tpu.memory_space<vmem>>, %arg3: memref<1x128xf32, #tpu.memory_space<vmem>>, %arg4: memref<2x128x128xbf16, #tpu.memory_space<vmem>>, %arg5: memref<2x1x128xf32, #tpu.memory_space<vmem>>, %arg6: memref<128x128xbf16, #tpu.memory_space<vmem>>, %arg7: memref<1x128xf32, #tpu.memory_space<vmem>>, %arg8: memref<8x128xf32, #tpu.memory_space<vmem>>) attributes {dimension_semantics = [#tpu.dimension_semantics<parallel>], iteration_bounds = array<i64: 1>, scalar_prefetch = 0 : i64, scratch_operands = 0 : i64, tpu.core_type = #tpu.core_type<tc>, window_params = [{transform_indices = @transform_0, window_bounds = array<i64: 8, 128>}, {pipeline_mode = #tpu.pipeline_mode<synchronous>, transform_indices = @transform_1, window_bounds = array<i64: 128, 128>}, {pipeline_mode = #tpu.pipeline_mode<synchronous>, transform_indices = @transform_2, window_bounds = array<i64: 1, 128>}, {pipeline_mode = #tpu.pipeline_mode<synchronous>, transform_indices = @transform_3, window_bounds = array<i64: 2, 128, 128>}, {pipeline_mode = #tpu.pipeline_mode<synchronous>, transform_indices = @transform_4, window_bounds = array<i64: 2, 1, 128>}, {pipeline_mode = #tpu.pipeline_mode<synchronous>, transform_indices = @transform_5, window_bounds = array<i64: 128, 128>}, {pipeline_mode = #tpu.pipeline_mode<synchronous>, transform_indices = @transform_6, window_bounds = array<i64: 1, 128>}, {transform_indices = @transform_7, window_bounds = array<i64: 8, 128>}]} {
    %c0 = arith.constant 0 : index
    %c0_0 = arith.constant 0 : index
    %0 = vector.load %arg1[%c0, %c0_0] : memref<8x128xf32, #tpu.memory_space<vmem>>, vector<8x128xf32>
    %1 = arith.truncf %0 : vector<8x128xf32> to vector<8x128xbf16>
    %c0_1 = arith.constant 0 : index
    %c0_2 = arith.constant 0 : index
    %2 = vector.load %arg2[%c0_1, %c0_2] : memref<128x128xbf16, #tpu.memory_space<vmem>>, vector<128x128xbf16>
    %cst = arith.constant dense<0.000000e+00> : vector<8x128xf32>
    %3 = tpu.matmul %1, %2, %cst {dimension_numbers = #tpu.dot_dimension_numbers<[1], [0], [0], [1], [0, 0, 1, 1], [], []>} : vector<8x128xbf16>, vector<128x128xbf16>, vector<8x128xf32> -> vector<8x128xf32>
    %c0_3 = arith.constant 0 : index
    %c0_4 = arith.constant 0 : index
    %4 = vector.load %arg3[%c0_3, %c0_4] : memref<1x128xf32, #tpu.memory_space<vmem>>, vector<1x128xf32>
    %5 = vector.broadcast %4 : vector<1x128xf32> to vector<8x128xf32>
    %6 = arith.addf %3, %5 : vector<8x128xf32>
    %cst_5 = arith.constant 0.000000e+00 : f32
    %7 = vector.broadcast %cst_5 : f32 to vector<8x128xf32>
    %8 = arith.cmpf oge, %6, %7 : vector<8x128xf32>
    %cst_6 = arith.constant 5.000000e-02 : f32
    %9 = vector.broadcast %cst_6 : f32 to vector<8x128xf32>
    %10 = arith.mulf %9, %6 : vector<8x128xf32>
    %11 = arith.select %8, %6, %10 : vector<8x128xi1>, vector<8x128xf32>
    %12 = arith.truncf %11 : vector<8x128xf32> to vector<8x128xbf16>
    %c0_7 = arith.constant 0 : index
    %c0_8 = arith.constant 0 : index
    %c0_9 = arith.constant 0 : index
    %13 = vector.load %arg4[%c0_7, %c0_8, %c0_9] : memref<2x128x128xbf16, #tpu.memory_space<vmem>>, vector<1x128x128xbf16>
    %14 = vector.shape_cast %13 : vector<1x128x128xbf16> to vector<128x128xbf16>
    %cst_10 = arith.constant dense<0.000000e+00> : vector<8x128xf32>
    %15 = tpu.matmul %12, %14, %cst_10 {dimension_numbers = #tpu.dot_dimension_numbers<[1], [0], [0], [1], [0, 0, 1, 1], [], []>} : vector<8x128xbf16>, vector<128x128xbf16>, vector<8x128xf32> -> vector<8x128xf32>
    %c0_11 = arith.constant 0 : index
    %c0_12 = arith.constant 0 : index
    %c0_13 = arith.constant 0 : index
    %16 = vector.load %arg5[%c0_11, %c0_12, %c0_13] : memref<2x1x128xf32, #tpu.memory_space<vmem>>, vector<1x1x128xf32>
    %17 = vector.shape_cast %16 : vector<1x1x128xf32> to vector<1x128xf32>
    %18 = vector.broadcast %17 : vector<1x128xf32> to vector<8x128xf32>
    %19 = arith.addf %15, %18 : vector<8x128xf32>
    %cst_14 = arith.constant 0.000000e+00 : f32
    %20 = vector.broadcast %cst_14 : f32 to vector<8x128xf32>
    %21 = arith.cmpf oge, %19, %20 : vector<8x128xf32>
    %cst_15 = arith.constant 5.000000e-02 : f32
    %22 = vector.broadcast %cst_15 : f32 to vector<8x128xf32>
    %23 = arith.mulf %22, %19 : vector<8x128xf32>
    %24 = arith.select %21, %19, %23 : vector<8x128xi1>, vector<8x128xf32>
    %25 = arith.truncf %24 : vector<8x128xf32> to vector<8x128xbf16>
    %c1 = arith.constant 1 : index
    %c0_16 = arith.constant 0 : index
    %c0_17 = arith.constant 0 : index
    %26 = vector.load %arg4[%c1, %c0_16, %c0_17] : memref<2x128x128xbf16, #tpu.memory_space<vmem>>, vector<1x128x128xbf16>
    %27 = vector.shape_cast %26 : vector<1x128x128xbf16> to vector<128x128xbf16>
    %cst_18 = arith.constant dense<0.000000e+00> : vector<8x128xf32>
    %28 = tpu.matmul %25, %27, %cst_18 {dimension_numbers = #tpu.dot_dimension_numbers<[1], [0], [0], [1], [0, 0, 1, 1], [], []>} : vector<8x128xbf16>, vector<128x128xbf16>, vector<8x128xf32> -> vector<8x128xf32>
    %c1_19 = arith.constant 1 : index
    %c0_20 = arith.constant 0 : index
    %c0_21 = arith.constant 0 : index
    %29 = vector.load %arg5[%c1_19, %c0_20, %c0_21] : memref<2x1x128xf32, #tpu.memory_space<vmem>>, vector<1x1x128xf32>
    %30 = vector.shape_cast %29 : vector<1x1x128xf32> to vector<1x128xf32>
    %31 = vector.broadcast %30 : vector<1x128xf32> to vector<8x128xf32>
    %32 = arith.addf %28, %31 : vector<8x128xf32>
    %cst_22 = arith.constant 0.000000e+00 : f32
    %33 = vector.broadcast %cst_22 : f32 to vector<8x128xf32>
    %34 = arith.cmpf oge, %32, %33 : vector<8x128xf32>
    %cst_23 = arith.constant 5.000000e-02 : f32
    %35 = vector.broadcast %cst_23 : f32 to vector<8x128xf32>
    %36 = arith.mulf %35, %32 : vector<8x128xf32>
    %37 = arith.select %34, %32, %36 : vector<8x128xi1>, vector<8x128xf32>
    %38 = arith.truncf %37 : vector<8x128xf32> to vector<8x128xbf16>
    %c0_24 = arith.constant 0 : index
    %c0_25 = arith.constant 0 : index
    %39 = vector.load %arg6[%c0_24, %c0_25] : memref<128x128xbf16, #tpu.memory_space<vmem>>, vector<128x128xbf16>
    %cst_26 = arith.constant dense<0.000000e+00> : vector<8x128xf32>
    %40 = tpu.matmul %38, %39, %cst_26 {dimension_numbers = #tpu.dot_dimension_numbers<[1], [0], [0], [1], [0, 0, 1, 1], [], []>} : vector<8x128xbf16>, vector<128x128xbf16>, vector<8x128xf32> -> vector<8x128xf32>
    %c0_27 = arith.constant 0 : index
    %c0_28 = arith.constant 0 : index
    %41 = vector.load %arg7[%c0_27, %c0_28] : memref<1x128xf32, #tpu.memory_space<vmem>>, vector<1x128xf32>
    %42 = vector.broadcast %41 : vector<1x128xf32> to vector<8x128xf32>
    %43 = arith.addf %40, %42 : vector<8x128xf32>
    %c0_29 = arith.constant 0 : index
    %c0_30 = arith.constant 0 : index
    %44 = vector.load %arg8[%c0_29, %c0_30] : memref<8x128xf32, #tpu.memory_space<vmem>>, vector<8x128xf32>
    tpu.vector_store %arg8[%c0_29, %c0_30], %43 {strides = array<i32>} : memref<8x128xf32, #tpu.memory_space<vmem>>, vector<8x128xf32>,
    return
  }
  func.func @transform_0(%arg0: i32) -> (i32, i32) {
    %c0_i32 = arith.constant 0 : i32
    %c0_i32_0 = arith.constant 0 : i32
    return %arg0, %c0_i32 : i32, i32
  }
  func.func @transform_1(%arg0: i32) -> (i32, i32) {
    %c0_i32 = arith.constant 0 : i32
    %c0_i32_0 = arith.constant 0 : i32
    %c0_i32_1 = arith.constant 0 : i32
    return %c0_i32, %c0_i32_0 : i32, i32
  }
  func.func @transform_2(%arg0: i32) -> (i32, i32) {
    %c0_i32 = arith.constant 0 : i32
    %c0_i32_0 = arith.constant 0 : i32
    %c0_i32_1 = arith.constant 0 : i32
    return %c0_i32, %c0_i32_0 : i32, i32
  }
  func.func @transform_3(%arg0: i32) -> (i32, i32, i32) {
    %c0_i32 = arith.constant 0 : i32
    %c0_i32_0 = arith.constant 0 : i32
    %c0_i32_1 = arith.constant 0 : i32
    %c0_i32_2 = arith.constant 0 : i32
    return %c0_i32, %c0_i32_0, %c0_i32_1 : i32, i32, i32
  }
  func.func @transform_4(%arg0: i32) -> (i32, i32, i32) {
    %c0_i32 = arith.constant 0 : i32
    %c0_i32_0 = arith.constant 0 : i32
    %c0_i32_1 = arith.constant 0 : i32
    %c0_i32_2 = arith.constant 0 : i32
    return %c0_i32, %c0_i32_0, %c0_i32_1 : i32, i32, i32
  }
  func.func @transform_5(%arg0: i32) -> (i32, i32) {
    %c0_i32 = arith.constant 0 : i32
    %c0_i32_0 = arith.constant 0 : i32
    %c0_i32_1 = arith.constant 0 : i32
    return %c0_i32, %c0_i32_0 : i32, i32
  }
  func.func @transform_6(%arg0: i32) -> (i32, i32) {
    %c0_i32 = arith.constant 0 : i32
    %c0_i32_0 = arith.constant 0 : i32
    %c0_i32_1 = arith.constant 0 : i32
    return %c0_i32, %c0_i32_0 : i32, i32
  }
  func.func @transform_7(%arg0: i32) -> (i32, i32) {
    %c0_i32 = arith.constant 0 : i32
    %c0_i32_0 = arith.constant 0 : i32
    return %arg0, %c0_i32 : i32, i32
  }
}

</mosaic_0001>

<llo_original>
// kernel: tpu_custom_call.1
$region0: #{tpu_custom_call.1}
  #allocation0 [shape = 'u32[]', space=smem, size = 0x4, offset = 0x4, fixed_abs, tag = 'smem constant byte address 0x4 - core index']
  #allocation1 [shape = 'u32[144,128]{1,0:T(1,128)}', space=vmem, size = 0x12000, scoped, tag = 'internal scratch']
  %s0 = inlined_call_operand.hbm [shape: f32[8,128], index: 0, kind: input, shape index: {}]
  %s1 = inlined_call_operand.hbm [shape: bf16[128,128], index: 1, kind: input, shape index: {}]
  %s2 = inlined_call_operand.vmem [shape: f32[1,128], index: 2, kind: input, shape index: {}]
  %s3 = inlined_call_operand.hbm [shape: bf16[2,128,128], index: 3, kind: input, shape index: {}]
  %s4 = inlined_call_operand.vmem [shape: f32[2,1,128], index: 4, kind: input, shape index: {}]
  %s5 = inlined_call_operand.hbm [shape: bf16[128,128], index: 5, kind: input, shape index: {}]
  %s6 = inlined_call_operand.vmem [shape: f32[1,128], index: 6, kind: input, shape index: {}]
  %s7 = inlined_call_operand.hbm [shape: f32[8,128], index: 7, kind: output, shape index: {}]
  %s8 = sld [smem:[#allocation0]]
  $region54: #{tpu_custom_call.1} parent=0
    _
  %s10 = ssub.s32 1, %s8
  %s11 = scalar_select 0, %s10, %s8
  $region1: #{tpu_custom_call.1} parent=0
    #allocation2 [shape = 'u8[4096]{0}', space=vmem, size = 0x1000, scoped, tag = 'input window, operand 0, single buffered']
    #allocation3 [shape = 's32[1]{0}', space=sflag, size = 0x4, scoped, tag = 'scoped memory for tpu_custom_call.1']
    #allocation4 [shape = 's32[1]{0}', space=sflag, size = 0x4, scoped, tag = 'scoped memory for tpu_custom_call.1']
    #allocation5 [shape = 'u8[32768]{0}', space=vmem, size = 0x8000, scoped, tag = 'input window, operand 1, single buffered']
    #allocation6 [shape = 's32[1]{0}', space=sflag, size = 0x4, scoped, tag = 'scoped memory for tpu_custom_call.1']
    #allocation7 [shape = 'u8[65536]{0}', space=vmem, size = 0x10000, scoped, tag = 'input window, operand 3, single buffered']
    #allocation8 [shape = 'u8[32768]{0}', space=vmem, size = 0x8000, scoped, tag = 'input window, operand 5, single buffered']
    #allocation9 [shape = 's32[1]{0}', space=sflag, size = 0x4, scoped, tag = 'scoped memory for tpu_custom_call.1']
    #allocation10 [shape = 'u8[4096]{0}', space=vmem, size = 0x1000, scoped, tag = 'output window, operand 0, single buffered']
    %12 = vsyncpa [#allocation3], 0
    %13 = vsyncpa [#allocation6], 0
    %14 = vsyncpa [#allocation9], 0
    %15 = vsyncpa [#allocation4], 0
    // Predicated region
    $region2: #{tpu_custom_call.1} parent=1 // pred_check
      _
    $region3: #{tpu_custom_call.1} parent=1 // pred_check_branch
      %17 = sbr.rel (0) target = $region5
    $region4: #{tpu_custom_call.1} parent=1 // pred_region
      %s19 = ssub.s32 128, 128
      %20 = vsyncadd [#allocation3], %s19
      %s22 = sshll.u32 [#allocation2], 4
      %s23 = int_to_ptr.vmem [resolvable:$true] %s22
      %25 = dma.hbm_to_vmem [thread:$0]  %s0, 128, %s23, [#allocation3]
    $region5: #{tpu_custom_call.1} parent=1 // pred_fallthru
      _
    // Predicated region
    $region6: #{tpu_custom_call.1} parent=1 // pred_check
      _
    $region7: #{tpu_custom_call.1} parent=1 // pred_check_branch
      %27 = sbr.rel (0) target = $region9
    $region8: #{tpu_custom_call.1} parent=1 // pred_region
      %s29 = ssub.s32 1024, 1024
      %30 = vsyncadd [#allocation6], %s29
      %s31 = sshll.u32 [#allocation5], 4
      %s32 = int_to_ptr.vmem [resolvable:$true] %s31
      %37 = dma.hbm_to_vmem [thread:$0]  %s1, 1024, %s32, [#allocation6], 64, 64, 4
    $region9: #{tpu_custom_call.1} parent=1 // pred_fallthru
      _
    // Predicated region
    $region10: #{tpu_custom_call.1} parent=1 // pred_check
      _
    $region11: #{tpu_custom_call.1} parent=1 // pred_check_branch
      %39 = sbr.rel (0) target = $region13
    $region12: #{tpu_custom_call.1} parent=1 // pred_region
      _
    $region13: #{tpu_custom_call.1} parent=1 // pred_fallthru
      _
    // Predicated region
    $region14: #{tpu_custom_call.1} parent=1 // pred_check
      _
    $region15: #{tpu_custom_call.1} parent=1 // pred_check_branch
      %41 = sbr.rel (0) target = $region17
    $region16: #{tpu_custom_call.1} parent=1 // pred_region
      %s43 = ssub.s32 2048, 2048
      %44 = vsyncadd [#allocation6], %s43
      %s45 = sshll.u32 [#allocation7], 4
      %s46 = int_to_ptr.vmem [resolvable:$true] %s45
      %51 = dma.hbm_to_vmem [thread:$0]  %s3, 2048, %s46, [#allocation6], 64, 64, 4
    $region17: #{tpu_custom_call.1} parent=1 // pred_fallthru
      _
    // Predicated region
    $region18: #{tpu_custom_call.1} parent=1 // pred_check
      _
    $region19: #{tpu_custom_call.1} parent=1 // pred_check_branch
      %53 = sbr.rel (0) target = $region21
    $region20: #{tpu_custom_call.1} parent=1 // pred_region
      _
    $region21: #{tpu_custom_call.1} parent=1 // pred_fallthru
      _
    // Predicated region
    $region22: #{tpu_custom_call.1} parent=1 // pred_check
      _
    $region23: #{tpu_custom_call.1} parent=1 // pred_check_branch
      %55 = sbr.rel (0) target = $region25
    $region24: #{tpu_custom_call.1} parent=1 // pred_region
      %s57 = ssub.s32 1024, 1024
      %58 = vsyncadd [#allocation9], %s57
      %s59 = sshll.u32 [#allocation8], 4
      %s60 = int_to_ptr.vmem [resolvable:$true] %s59
      %65 = dma.hbm_to_vmem [thread:$0]  %s5, 1024, %s60, [#allocation9], 64, 64, 4
    $region25: #{tpu_custom_call.1} parent=1 // pred_fallthru
      _
    // Predicated region
    $region26: #{tpu_custom_call.1} parent=1 // pred_check
      _
    $region27: #{tpu_custom_call.1} parent=1 // pred_check_branch
      %67 = sbr.rel (0) target = $region29
    $region28: #{tpu_custom_call.1} parent=1 // pred_region
      _
    $region29: #{tpu_custom_call.1} parent=1 // pred_fallthru
      _
    // Predicated region
    $region30: #{tpu_custom_call.1} parent=1 // pred_check
      _
    $region31: #{tpu_custom_call.1} parent=1 // pred_check_branch
      %69 = sbr.rel (0) target = $region33
    $region32: #{tpu_custom_call.1} parent=1 // pred_region
      %70 = dma.done [#allocation3], 128
    $region33: #{tpu_custom_call.1} parent=1 // pred_fallthru
      _
    // Predicated region
    $region34: #{tpu_custom_call.1} parent=1 // pred_check
      _
    $region35: #{tpu_custom_call.1} parent=1 // pred_check_branch
      %72 = sbr.rel (0) target = $region37
    $region36: #{tpu_custom_call.1} parent=1 // pred_region
      %73 = dma.done [#allocation6], 1024
    $region37: #{tpu_custom_call.1} parent=1 // pred_fallthru
      _
    // Predicated region
    $region38: #{tpu_custom_call.1} parent=1 // pred_check
      _
    $region39: #{tpu_custom_call.1} parent=1 // pred_check_branch
      %75 = sbr.rel (0) target = $region41
    $region40: #{tpu_custom_call.1} parent=1 // pred_region
      %76 = dma.done [#allocation6], 2048
    $region41: #{tpu_custom_call.1} parent=1 // pred_fallthru
      _
    // Predicated region
    $region42: #{tpu_custom_call.1} parent=1 // pred_check
      _
    $region43: #{tpu_custom_call.1} parent=1 // pred_check_branch
      %78 = sbr.rel (0) target = $region45
    $region44: #{tpu_custom_call.1} parent=1 // pred_region
      %79 = dma.done [#allocation9], 1024
    $region45: #{tpu_custom_call.1} parent=1 // pred_fallthru
      _
    %v81 = vld [vmem:[#allocation2] sm:$0xff]
    %v82 = vpack.c.bf16 %v81, %v81
    %v83 = vld [vmem:[#allocation5] sm:$0xf]
    %v84 = vld [vmem:[#allocation5 + $0x4] sm:$0xf]
    %v85 = vld [vmem:[#allocation5 + $0x8] sm:$0xf]
    %v86 = vld [vmem:[#allocation5 + $0xc] sm:$0xf]
    %v87 = vld [vmem:[#allocation5 + $0x10] sm:$0xf]
    %v88 = vld [vmem:[#allocation5 + $0x14] sm:$0xf]
    %v89 = vld [vmem:[#allocation5 + $0x18] sm:$0xf]
    %v90 = vld [vmem:[#allocation5 + $0x1c] sm:$0xf]
    %v91 = vld [vmem:[#allocation5 + $0x20] sm:$0xf]
    %v92 = vld [vmem:[#allocation5 + $0x24] sm:$0xf]
    %v93 = vld [vmem:[#allocation5 + $0x28] sm:$0xf]
    %v94 = vld [vmem:[#allocation5 + $0x2c] sm:$0xf]
    %v95 = vld [vmem:[#allocation5 + $0x30] sm:$0xf]
    %v96 = vld [vmem:[#allocation5 + $0x34] sm:$0xf]
    %v97 = vld [vmem:[#allocation5 + $0x38] sm:$0xf]
    %v98 = vld [vmem:[#allocation5 + $0x3c] sm:$0xf]
    %v99 = vld [vmem:[%s2] sm:$0x1]
    %v101 = vlaneseq
    %v102 = vshrl.u32 %v101, 7
    %v103 = vsub.s32 0, %v102
    %v104 = vrot.slane %v99, %v103
    %v122 = vunpack.c.l.b16 %v83
    %v123 = vunpack.c.l.b16 %v84
    %v124 = vunpack.c.l.b16 %v85
    %v125 = vunpack.c.l.b16 %v86
    %v126 = vunpack.c.l.b16 %v87
    %v127 = vunpack.c.l.b16 %v88
    %v128 = vunpack.c.l.b16 %v89
    %v129 = vunpack.c.l.b16 %v90
    %v130 = vunpack.c.l.b16 %v91
    %v131 = vunpack.c.l.b16 %v92
    %v132 = vunpack.c.l.b16 %v93
    %v133 = vunpack.c.l.b16 %v94
    %v134 = vunpack.c.l.b16 %v95
    %v135 = vunpack.c.l.b16 %v96
    %v136 = vunpack.c.l.b16 %v97
    %v137 = vunpack.c.l.b16 %v98
    %v138 = vpack.c.b16 %v123, %v122
    %v139 = vpack.c.b16 %v125, %v124
    %v140 = vpack.c.b16 %v127, %v126
    %v141 = vpack.c.b16 %v129, %v128
    %v142 = vpack.c.b16 %v131, %v130
    %v143 = vpack.c.b16 %v133, %v132
    %v144 = vpack.c.b16 %v135, %v134
    %v145 = vpack.c.b16 %v137, %v136
    %154 = vmatprep.subr.bf16.mxu0 0
    %155 = vmatpush1.bf16.msra.mxu0 %v145
    %156 = vmatprep.subr.bf16.mxu0 0
    %157 = vmatpush1.bf16.msra.mxu0 %v144
    %158 = vmatprep.subr.bf16.mxu0 0
    %159 = vmatpush1.bf16.msra.mxu0 %v143
    %160 = vmatprep.subr.bf16.mxu0 0
    %161 = vmatpush1.bf16.msra.mxu0 %v142
    %162 = vmatprep.subr.bf16.mxu0 0
    %163 = vmatpush1.bf16.msra.mxu0 %v141
    %164 = vmatprep.subr.bf16.mxu0 0
    %165 = vmatpush1.bf16.msra.mxu0 %v140
    %166 = vmatprep.subr.bf16.mxu0 0
    %167 = vmatpush1.bf16.msra.mxu0 %v139
    %168 = vmatprep.subr.bf16.mxu0 0
    %169 = vmatpush1.bf16.msra.mxu0 %v138
    %170 = vmatprep.subr.bf16.mxu0 0
    %171 = vmatpush2.bf16.msra.mxu0 0
    %172 = vmatprep.subr.bf16.mxu0 0
    %173 = vmatpush2.bf16.msra.mxu0 0
    %174 = vmatprep.subr.bf16.mxu0 0
    %175 = vmatpush2.bf16.msra.mxu0 0
    %176 = vmatprep.subr.bf16.mxu0 0
    %177 = vmatpush2.bf16.msra.mxu0 0
    %178 = vmatprep.subr.bf16.mxu0 0
    %179 = vmatpush2.bf16.msra.mxu0 0
    %180 = vmatprep.subr.bf16.mxu0 0
    %181 = vmatpush2.bf16.msra.mxu0 0
    %182 = vmatprep.subr.bf16.mxu0 0
    %183 = vmatpush2.bf16.msra.mxu0 0
    %184 = vmatprep.subr.bf16.mxu0 0
    %185 = vmatpush2.bf16.msra.mxu0 0
    %186 = vmatprep.mubr.bf16.mxu0 0
    %187 = vmatmul.mubr.bf16.gmra.mxu0 %v82
    %v188 = vpop.f32.mrf.mxu0
    %v189 = vadd.f32 %v104, %v188
    %v190 = vpop.f32.mrf.mxu0
    %v191 = vpop.f32.mrf.mxu0
    %v192 = vpop.f32.mrf.mxu0
    %193 = vdwg.mxu0
    %vm194 = vcmp.ge.f32.partialorder %v189, 0.0
    %v195 = vmul.f32 %v189, 0.05
    %v196 = vsel %vm194, %v189, %v195
    %v197 = vpack.c.bf16 %v196, %v196
    %v198 = vld [vmem:[#allocation7] sm:$0xf]
    %v199 = vld [vmem:[#allocation7 + $0x4] sm:$0xf]
    %v200 = vld [vmem:[#allocation7 + $0x8] sm:$0xf]
    %v201 = vld [vmem:[#allocation7 + $0xc] sm:$0xf]
    %v202 = vld [vmem:[#allocation7 + $0x10] sm:$0xf]
    %v203 = vld [vmem:[#allocation7 + $0x14] sm:$0xf]
    %v204 = vld [vmem:[#allocation7 + $0x18] sm:$0xf]
    %v205 = vld [vmem:[#allocation7 + $0x1c] sm:$0xf]
    %v206 = vld [vmem:[#allocation7 + $0x20] sm:$0xf]
    %v207 = vld [vmem:[#allocation7 + $0x24] sm:$0xf]
    %v208 = vld [vmem:[#allocation7 + $0x28] sm:$0xf]
    %v209 = vld [vmem:[#allocation7 + $0x2c] sm:$0xf]
    %v210 = vld [vmem:[#allocation7 + $0x30] sm:$0xf]
    %v211 = vld [vmem:[#allocation7 + $0x34] sm:$0xf]
    %v212 = vld [vmem:[#allocation7 + $0x38] sm:$0xf]
    %v213 = vld [vmem:[#allocation7 + $0x3c] sm:$0xf]
    %v214 = vld [vmem:[%s4] sm:$0x1]
    %v216 = vlaneseq
    %v217 = vshrl.u32 %v216, 7
    %v218 = vsub.s32 0, %v217
    %v219 = vrot.slane %v214, %v218
    %v237 = vunpack.c.l.b16 %v198
    %v238 = vunpack.c.l.b16 %v199
    %v239 = vunpack.c.l.b16 %v200
    %v240 = vunpack.c.l.b16 %v201
    %v241 = vunpack.c.l.b16 %v202
    %v242 = vunpack.c.l.b16 %v203
    %v243 = vunpack.c.l.b16 %v204
    %v244 = vunpack.c.l.b16 %v205
    %v245 = vunpack.c.l.b16 %v206
    %v246 = vunpack.c.l.b16 %v207
    %v247 = vunpack.c.l.b16 %v208
    %v248 = vunpack.c.l.b16 %v209
    %v249 = vunpack.c.l.b16 %v210
    %v250 = vunpack.c.l.b16 %v211
    %v251 = vunpack.c.l.b16 %v212
    %v252 = vunpack.c.l.b16 %v213
    %v253 = vpack.c.b16 %v238, %v237
    %v254 = vpack.c.b16 %v240, %v239
    %v255 = vpack.c.b16 %v242, %v241
    %v256 = vpack.c.b16 %v244, %v243
    %v257 = vpack.c.b16 %v246, %v245
    %v258 = vpack.c.b16 %v248, %v247
    %v259 = vpack.c.b16 %v250, %v249
    %v260 = vpack.c.b16 %v252, %v251
    %269 = vmatprep.subr.bf16.mxu0 0
    %270 = vmatpush1.bf16.msra.mxu0 %v260
    %271 = vmatprep.subr.bf16.mxu0 0
    %272 = vmatpush1.bf16.msra.mxu0 %v259
    %273 = vmatprep.subr.bf16.mxu0 0
    %274 = vmatpush1.bf16.msra.mxu0 %v258
    %275 = vmatprep.subr.bf16.mxu0 0
    %276 = vmatpush1.bf16.msra.mxu0 %v257
    %277 = vmatprep.subr.bf16.mxu0 0
    %278 = vmatpush1.bf16.msra.mxu0 %v256
    %279 = vmatprep.subr.bf16.mxu0 0
    %280 = vmatpush1.bf16.msra.mxu0 %v255
    %281 = vmatprep.subr.bf16.mxu0 0
    %282 = vmatpush1.bf16.msra.mxu0 %v254
    %283 = vmatprep.subr.bf16.mxu0 0
    %284 = vmatpush1.bf16.msra.mxu0 %v253
    %285 = vmatprep.subr.bf16.mxu0 0
    %286 = vmatpush2.bf16.msra.mxu0 0
    %287 = vmatprep.subr.bf16.mxu0 0
    %288 = vmatpush2.bf16.msra.mxu0 0
    %289 = vmatprep.subr.bf16.mxu0 0
    %290 = vmatpush2.bf16.msra.mxu0 0
    %291 = vmatprep.subr.bf16.mxu0 0
    %292 = vmatpush2.bf16.msra.mxu0 0
    %293 = vmatprep.subr.bf16.mxu0 0
    %294 = vmatpush2.bf16.msra.mxu0 0
    %295 = vmatprep.subr.bf16.mxu0 0
    %296 = vmatpush2.bf16.msra.mxu0 0
    %297 = vmatprep.subr.bf16.mxu0 0
    %298 = vmatpush2.bf16.msra.mxu0 0
    %299 = vmatprep.subr.bf16.mxu0 0
    %300 = vmatpush2.bf16.msra.mxu0 0
    %301 = vmatprep.mubr.bf16.mxu0 0
    %302 = vmatmul.mubr.bf16.gmra.mxu0 %v197
    %v303 = vpop.f32.mrf.mxu0
    %v304 = vadd.f32 %v219, %v303
    %v305 = vpop.f32.mrf.mxu0
    %v306 = vpop.f32.mrf.mxu0
    %v307 = vpop.f32.mrf.mxu0
    %308 = vdwg.mxu0
    %vm309 = vcmp.ge.f32.partialorder %v304, 0.0
    %v310 = vmul.f32 %v304, 0.05
    %v311 = vsel %vm309, %v304, %v310
    %v312 = vpack.c.bf16 %v311, %v311
    %s313 = scalar_lea.vmem [#allocation7], 64
    %v314 = vld [vmem:[%s313] sm:$0xf]
    %v315 = vld [vmem:[%s313 + $0x4] sm:$0xf]
    %v316 = vld [vmem:[%s313 + $0x8] sm:$0xf]
    %v317 = vld [vmem:[%s313 + $0xc] sm:$0xf]
    %v318 = vld [vmem:[%s313 + $0x10] sm:$0xf]
    %v319 = vld [vmem:[%s313 + $0x14] sm:$0xf]
    %v320 = vld [vmem:[%s313 + $0x18] sm:$0xf]
    %v321 = vld [vmem:[%s313 + $0x1c] sm:$0xf]
    %v322 = vld [vmem:[%s313 + $0x20] sm:$0xf]
    %v323 = vld [vmem:[%s313 + $0x24] sm:$0xf]
    %v324 = vld [vmem:[%s313 + $0x28] sm:$0xf]
    %v325 = vld [vmem:[%s313 + $0x2c] sm:$0xf]
    %v326 = vld [vmem:[%s313 + $0x30] sm:$0xf]
    %v327 = vld [vmem:[%s313 + $0x34] sm:$0xf]
    %v328 = vld [vmem:[%s313 + $0x38] sm:$0xf]
    %v329 = vld [vmem:[%s313 + $0x3c] sm:$0xf]
    %s330 = scalar_lea.vmem %s4, 1
    %v331 = vld [vmem:[%s330] sm:$0x1]
    %v333 = vlaneseq
    %v334 = vshrl.u32 %v333, 7
    %v335 = vsub.s32 0, %v334
    %v336 = vrot.slane %v331, %v335
    %v354 = vunpack.c.l.b16 %v314
    %v355 = vunpack.c.l.b16 %v315
    %v356 = vunpack.c.l.b16 %v316
    %v357 = vunpack.c.l.b16 %v317
    %v358 = vunpack.c.l.b16 %v318
    %v359 = vunpack.c.l.b16 %v319
    %v360 = vunpack.c.l.b16 %v320
    %v361 = vunpack.c.l.b16 %v321
    %v362 = vunpack.c.l.b16 %v322
    %v363 = vunpack.c.l.b16 %v323
    %v364 = vunpack.c.l.b16 %v324
    %v365 = vunpack.c.l.b16 %v325
    %v366 = vunpack.c.l.b16 %v326
    %v367 = vunpack.c.l.b16 %v327
    %v368 = vunpack.c.l.b16 %v328
    %v369 = vunpack.c.l.b16 %v329
    %v370 = vpack.c.b16 %v355, %v354
    %v371 = vpack.c.b16 %v357, %v356
    %v372 = vpack.c.b16 %v359, %v358
    %v373 = vpack.c.b16 %v361, %v360
    %v374 = vpack.c.b16 %v363, %v362
    %v375 = vpack.c.b16 %v365, %v364
    %v376 = vpack.c.b16 %v367, %v366
    %v377 = vpack.c.b16 %v369, %v368
    %386 = vmatprep.subr.bf16.mxu0 0
    %387 = vmatpush1.bf16.msra.mxu0 %v377
    %388 = vmatprep.subr.bf16.mxu0 0
    %389 = vmatpush1.bf16.msra.mxu0 %v376
    %390 = vmatprep.subr.bf16.mxu0 0
    %391 = vmatpush1.bf16.msra.mxu0 %v375
    %392 = vmatprep.subr.bf16.mxu0 0
    %393 = vmatpush1.bf16.msra.mxu0 %v374
    %394 = vmatprep.subr.bf16.mxu0 0
    %395 = vmatpush1.bf16.msra.mxu0 %v373
    %396 = vmatprep.subr.bf16.mxu0 0
    %397 = vmatpush1.bf16.msra.mxu0 %v372
    %398 = vmatprep.subr.bf16.mxu0 0
    %399 = vmatpush1.bf16.msra.mxu0 %v371
    %400 = vmatprep.subr.bf16.mxu0 0
    %401 = vmatpush1.bf16.msra.mxu0 %v370
    %402 = vmatprep.subr.bf16.mxu0 0
    %403 = vmatpush2.bf16.msra.mxu0 0
    %404 = vmatprep.subr.bf16.mxu0 0
    %405 = vmatpush2.bf16.msra.mxu0 0
    %406 = vmatprep.subr.bf16.mxu0 0
    %407 = vmatpush2.bf16.msra.mxu0 0
    %408 = vmatprep.subr.bf16.mxu0 0
    %409 = vmatpush2.bf16.msra.mxu0 0
    %410 = vmatprep.subr.bf16.mxu0 0
    %411 = vmatpush2.bf16.msra.mxu0 0
    %412 = vmatprep.subr.bf16.mxu0 0
    %413 = vmatpush2.bf16.msra.mxu0 0
    %414 = vmatprep.subr.bf16.mxu0 0
    %415 = vmatpush2.bf16.msra.mxu0 0
    %416 = vmatprep.subr.bf16.mxu0 0
    %417 = vmatpush2.bf16.msra.mxu0 0
    %418 = vmatprep.mubr.bf16.mxu0 0
    %419 = vmatmul.mubr.bf16.gmra.mxu0 %v312
    %v420 = vpop.f32.mrf.mxu0
    %v421 = vadd.f32 %v336, %v420
    %v422 = vpop.f32.mrf.mxu0
    %v423 = vpop.f32.mrf.mxu0
    %v424 = vpop.f32.mrf.mxu0
    %425 = vdwg.mxu0
    %vm426 = vcmp.ge.f32.partialorder %v421, 0.0
    %v427 = vmul.f32 %v421, 0.05
    %v428 = vsel %vm426, %v421, %v427
    %v429 = vpack.c.bf16 %v428, %v428
    %v430 = vld [vmem:[#allocation8] sm:$0xf]
    %v431 = vld [vmem:[#allocation8 + $0x4] sm:$0xf]
    %v432 = vld [vmem:[#allocation8 + $0x8] sm:$0xf]
    %v433 = vld [vmem:[#allocation8 + $0xc] sm:$0xf]
    %v434 = vld [vmem:[#allocation8 + $0x10] sm:$0xf]
    %v435 = vld [vmem:[#allocation8 + $0x14] sm:$0xf]
    %v436 = vld [vmem:[#allocation8 + $0x18] sm:$0xf]
    %v437 = vld [vmem:[#allocation8 + $0x1c] sm:$0xf]
    %v438 = vld [vmem:[#allocation8 + $0x20] sm:$0xf]
    %v439 = vld [vmem:[#allocation8 + $0x24] sm:$0xf]
    %v440 = vld [vmem:[#allocation8 + $0x28] sm:$0xf]
    %v441 = vld [vmem:[#allocation8 + $0x2c] sm:$0xf]
    %v442 = vld [vmem:[#allocation8 + $0x30] sm:$0xf]
    %v443 = vld [vmem:[#allocation8 + $0x34] sm:$0xf]
    %v444 = vld [vmem:[#allocation8 + $0x38] sm:$0xf]
    %v445 = vld [vmem:[#allocation8 + $0x3c] sm:$0xf]
    %v446 = vld [vmem:[%s6] sm:$0x1]
    %v448 = vlaneseq
    %v449 = vshrl.u32 %v448, 7
    %v450 = vsub.s32 0, %v449
    %v451 = vrot.slane %v446, %v450
    %v469 = vunpack.c.l.b16 %v430
    %v470 = vunpack.c.l.b16 %v431
    %v471 = vunpack.c.l.b16 %v432
    %v472 = vunpack.c.l.b16 %v433
    %v473 = vunpack.c.l.b16 %v434
    %v474 = vunpack.c.l.b16 %v435
    %v475 = vunpack.c.l.b16 %v436
    %v476 = vunpack.c.l.b16 %v437
    %v477 = vunpack.c.l.b16 %v438
    %v478 = vunpack.c.l.b16 %v439
    %v479 = vunpack.c.l.b16 %v440
    %v480 = vunpack.c.l.b16 %v441
    %v481 = vunpack.c.l.b16 %v442
    %v482 = vunpack.c.l.b16 %v443
    %v483 = vunpack.c.l.b16 %v444
    %v484 = vunpack.c.l.b16 %v445
    %v485 = vpack.c.b16 %v470, %v469
    %v486 = vpack.c.b16 %v472, %v471
    %v487 = vpack.c.b16 %v474, %v473
    %v488 = vpack.c.b16 %v476, %v475
    %v489 = vpack.c.b16 %v478, %v477
    %v490 = vpack.c.b16 %v480, %v479
    %v491 = vpack.c.b16 %v482, %v481
    %v492 = vpack.c.b16 %v484, %v483
    %501 = vmatprep.subr.bf16.mxu0 0
    %502 = vmatpush1.bf16.msra.mxu0 %v492
    %503 = vmatprep.subr.bf16.mxu0 0
    %504 = vmatpush1.bf16.msra.mxu0 %v491
    %505 = vmatprep.subr.bf16.mxu0 0
    %506 = vmatpush1.bf16.msra.mxu0 %v490
    %507 = vmatprep.subr.bf16.mxu0 0
    %508 = vmatpush1.bf16.msra.mxu0 %v489
    %509 = vmatprep.subr.bf16.mxu0 0
    %510 = vmatpush1.bf16.msra.mxu0 %v488
    %511 = vmatprep.subr.bf16.mxu0 0
    %512 = vmatpush1.bf16.msra.mxu0 %v487
    %513 = vmatprep.subr.bf16.mxu0 0
    %514 = vmatpush1.bf16.msra.mxu0 %v486
    %515 = vmatprep.subr.bf16.mxu0 0
    %516 = vmatpush1.bf16.msra.mxu0 %v485
    %517 = vmatprep.subr.bf16.mxu0 0
    %518 = vmatpush2.bf16.msra.mxu0 0
    %519 = vmatprep.subr.bf16.mxu0 0
    %520 = vmatpush2.bf16.msra.mxu0 0
    %521 = vmatprep.subr.bf16.mxu0 0
    %522 = vmatpush2.bf16.msra.mxu0 0
    %523 = vmatprep.subr.bf16.mxu0 0
    %524 = vmatpush2.bf16.msra.mxu0 0
    %525 = vmatprep.subr.bf16.mxu0 0
    %526 = vmatpush2.bf16.msra.mxu0 0
    %527 = vmatprep.subr.bf16.mxu0 0
    %528 = vmatpush2.bf16.msra.mxu0 0
    %529 = vmatprep.subr.bf16.mxu0 0
    %530 = vmatpush2.bf16.msra.mxu0 0
    %531 = vmatprep.subr.bf16.mxu0 0
    %532 = vmatpush2.bf16.msra.mxu0 0
    %533 = vmatprep.mubr.bf16.mxu0 0
    %534 = vmatmul.mubr.bf16.gmra.mxu0 %v429
    %v535 = vpop.f32.mrf.mxu0
    %v536 = vadd.f32 %v451, %v535
    %v537 = vpop.f32.mrf.mxu0
    %v538 = vpop.f32.mrf.mxu0
    %v539 = vpop.f32.mrf.mxu0
    %540 = vdwg.mxu0
    %541 = vst [vmem:[#allocation10] sm:$0xff] %v536
    // Predicated region
    $region46: #{tpu_custom_call.1} parent=1 // pred_check
      _
    $region47: #{tpu_custom_call.1} parent=1 // pred_check_branch
      %543 = sbr.rel (0) target = $region49
    $region48: #{tpu_custom_call.1} parent=1 // pred_region
      %s545 = ssub.s32 128, 128
      %546 = vsyncadd [#allocation4], %s545
      %s548 = sshll.u32 [#allocation10], 4
      %s549 = int_to_ptr.vmem [resolvable:$true] %s548
      %551 = dma.vmem_to_hbm [thread:$0]  %s549, 128, %s7, [#allocation4]
    $region49: #{tpu_custom_call.1} parent=1 // pred_fallthru
      _
    // Predicated region
    $region50: #{tpu_custom_call.1} parent=1 // pred_check
      _
    $region51: #{tpu_custom_call.1} parent=1 // pred_check_branch
      %553 = sbr.rel (0) target = $region53
    $region52: #{tpu_custom_call.1} parent=1 // pred_region
      %554 = dma.done [#allocation4], 128
    $region53: #{tpu_custom_call.1} parent=1 // pred_fallthru
      _
    %555 = vsyncpa [#allocation3], 1
    %556 = vsyncpa [#allocation6], 1
    %557 = vsyncpa [#allocation9], 1
    %558 = vsyncpa [#allocation4], 1

</llo_original>
